<compile_context>
chip_gen: v7x
topology: tpu7x:2x2x1
jax: 0.10.0
libtpu: 0.0.40
codegen_flags: <defaults>
</compile_context>

<pallas_src>
import functools

import jax
import jax.numpy as jnp
from jax.experimental import pallas as pl
from jax.experimental.pallas import tpu as pltpu


def conv3x3_relu_kernel(x_ref, w_ref, b_ref, o_ref, *, tH, W, Cin):
    """One (batch, H-band) grid step: 3x3 same conv + bias + ReLU.

    x_ref: (1, H+2, W+2, Cin)  whole padded NHWC image for batch n (bf16)
    w_ref: (9*Cin, Cout_p)     im2col weight slab (bf16), Cout padded to 128
    b_ref: (1, Cout_p)         f32 bias row (zero padded)
    o_ref: (1, tH*W, Cout_p)   lane-dense f32 output band
    """
    band = pl.program_id(1)
    h0 = pl.multiple_of(band * tH, tH)

    # Halo read: tH output rows need tH+2 padded input rows (overlapping reads
    # from the VMEM-resident image are free; no per-band re-DMA).
    xb = x_ref[0, pl.ds(h0, tH + 2), :, :]            # (tH+2, W+2, Cin)

    # Build the im2col slab once; column order (kh*3+kw)*Cin + c matches the
    # weight slab layout.  Then a single fused MXU matmul with K = 9*Cin.
    cols = []
    for kh in range(3):
        for kw in range(3):
            cols.append(xb[kh:kh + tH, kw:kw + W, :].reshape(tH * W, Cin))
    patch = jnp.concatenate(cols, axis=-1)            # (tH*W, 9*Cin) bf16

    acc = jnp.dot(patch, w_ref[...], preferred_element_type=jnp.float32)
    acc = acc + b_ref[...]                            # broadcast (1, Cout_p)
    o_ref[0] = jnp.maximum(acc, 0.0).astype(o_ref.dtype)


def backbone_forward(x_nchw, weight, bias, *, tile_h=8):
    """Equivalent of Backbone.forward with backbone = Conv2d(3x3, pad=1) + ReLU.

    x_nchw : (N, Cin, H, W)    float32
    weight : (Cout, Cin, 3, 3) PyTorch Conv2d weight layout
    bias   : (Cout,)
    returns: (N, Cout, H, W)
    """
    N, Cin, H, W = x_nchw.shape
    Cout = weight.shape[0]

    if H % tile_h != 0:
        tile_h = H                                    # fall back to whole image
    assert (tile_h * W) % 8 == 0, "output band M dim must be sublane aligned"
    n_bands = H // tile_h
    cout_p = ((Cout + 127) // 128) * 128              # lane-dense output width

    # Glue (fused into one XLA pass): NCHW->NHWC, pad H/W halo, bf16 cast.
    x_nhwc = jnp.transpose(x_nchw, (0, 2, 3, 1))
    x_pad = jnp.pad(x_nhwc, ((0, 0), (1, 1), (1, 1), (0, 0))).astype(jnp.bfloat16)

    # Weight slab (9*Cin, Cout_p) — tap-major, channel-minor rows; bias row.
    w_slab = jnp.transpose(weight, (2, 3, 1, 0)).reshape(9 * Cin, Cout)
    w_slab = jnp.pad(w_slab, ((0, 0), (0, cout_p - Cout))).astype(jnp.bfloat16)
    b_row = jnp.pad(bias, (0, cout_p - Cout)).reshape(1, cout_p).astype(jnp.float32)

    kernel = functools.partial(conv3x3_relu_kernel, tH=tile_h, W=W, Cin=Cin)

    out_flat = pl.pallas_call(
        kernel,
        out_shape=jax.ShapeDtypeStruct((N, H * W, cout_p), x_nchw.dtype),
        grid=(N, n_bands),
        in_specs=[
            # Full padded image per batch n (block index constant over bands
            # -> fetched once per n, revisited from VMEM).
            pl.BlockSpec((1, H + 2, W + 2, Cin), lambda n, b: (n, 0, 0, 0)),
            pl.BlockSpec((9 * Cin, cout_p), lambda n, b: (0, 0)),
            pl.BlockSpec((1, cout_p), lambda n, b: (0, 0)),
        ],
        out_specs=pl.BlockSpec((1, tile_h * W, cout_p), lambda n, b: (n, b, 0)),
        compiler_params=pltpu.CompilerParams(
            dimension_semantics=("parallel", "parallel"),
            vmem_limit_bytes=64 * 1024 * 1024,
        ),
    )(x_pad, w_slab, b_row)

    out = out_flat[:, :, :Cout].reshape(N, H, W, Cout)
    return jnp.transpose(out, (0, 3, 1, 2))           # back to NCHW


if __name__ == "__main__":
    # Small deterministic setup consistent with the module's conv backbone.
    N, Cin, H, W, Cout = 2, 4, 16, 16, 8
    key = jax.random.PRNGKey(0)
    kx, kw, kb = jax.random.split(key, 3)

    x = jax.random.normal(kx, (N, Cin, H, W), dtype=jnp.float32)
    weight = 0.1 * jax.random.normal(kw, (Cout, Cin, 3, 3), dtype=jnp.float32)
    bias = 0.1 * jax.random.normal(kb, (Cout,), dtype=jnp.float32)

    y = backbone_forward(x, weight, bias)
    y = jax.block_until_ready(y)

    # Cross-check against XLA's native conv (same semantics as nn.Conv2d + ReLU).
    y_ref = jax.lax.conv_general_dilated(
        x, weight, window_strides=(1, 1), padding="SAME",
        dimension_numbers=("NCHW", "OIHW", "NCHW"),
    ) + bias.reshape(1, Cout, 1, 1)
    y_ref = jnp.maximum(y_ref, 0.0)

    assert y.shape == (N, Cout, H, W)
    # bf16 activations/weights with f32 accumulation -> relaxed tolerance.
    assert jnp.allclose(y, y_ref, atol=2e-2, rtol=2e-2)
    print("KERNEL_OK")
</pallas_src>

<mosaic_0001>
module attributes {stable_mosaic.version = 11 : i64} {
  func.func @conv3x3_relu_kernel(%arg0: i32, %arg1: i32, %arg2: memref<1x18x18x4xbf16, #tpu.memory_space<vmem>>, %arg3: memref<36x128xbf16, #tpu.memory_space<vmem>>, %arg4: memref<1x128xf32, #tpu.memory_space<vmem>>, %arg5: memref<1x128x128xf32, #tpu.memory_space<vmem>>) attributes {dimension_semantics = [#tpu.dimension_semantics<parallel>, #tpu.dimension_semantics<parallel>], iteration_bounds = array<i64: 2, 2>, scalar_prefetch = 0 : i64, scratch_operands = 0 : i64, tpu.core_type = #tpu.core_type<tc>, window_params = [{transform_indices = @transform_0, window_bounds = array<i64: 1, 18, 18, 4>}, {pipeline_mode = #tpu.pipeline_mode<synchronous>, transform_indices = @transform_1, window_bounds = array<i64: 36, 128>}, {pipeline_mode = #tpu.pipeline_mode<synchronous>, transform_indices = @transform_2, window_bounds = array<i64: 1, 128>}, {transform_indices = @transform_3, window_bounds = array<i64: 1, 128, 128>}]} {
    %c8_i32 = arith.constant 8 : i32
    %0 = arith.muli %arg1, %c8_i32 : i32
    %1 = tpu.assume_multiple %0, 8 : i32
    %c0 = arith.constant 0 : index
    %2 = arith.index_cast %1 : i32 to index
    %c0_0 = arith.constant 0 : index
    %c0_1 = arith.constant 0 : index
    %3 = vector.load %arg2[%c0, %2, %c0_0, %c0_1] : memref<1x18x18x4xbf16, #tpu.memory_space<vmem>>, vector<1x10x18x4xbf16>
    %4 = vector.shape_cast %3 : vector<1x10x18x4xbf16> to vector<10x18x4xbf16>
    %5 = vector.extract_strided_slice %4 {offsets = [0, 0, 0], sizes = [8, 16, 4], strides = [1, 1, 1]} : vector<10x18x4xbf16> to vector<8x16x4xbf16>
    %6 = vector.shape_cast %5 : vector<8x16x4xbf16> to vector<128x4xbf16>
    %7 = vector.extract_strided_slice %4 {offsets = [0, 1, 0], sizes = [8, 16, 4], strides = [1, 1, 1]} : vector<10x18x4xbf16> to vector<8x16x4xbf16>
    %8 = vector.shape_cast %7 : vector<8x16x4xbf16> to vector<128x4xbf16>
    %9 = vector.extract_strided_slice %4 {offsets = [0, 2, 0], sizes = [8, 16, 4], strides = [1, 1, 1]} : vector<10x18x4xbf16> to vector<8x16x4xbf16>
    %10 = vector.shape_cast %9 : vector<8x16x4xbf16> to vector<128x4xbf16>
    %11 = vector.extract_strided_slice %4 {offsets = [1, 0, 0], sizes = [8, 16, 4], strides = [1, 1, 1]} : vector<10x18x4xbf16> to vector<8x16x4xbf16>
    %12 = vector.shape_cast %11 : vector<8x16x4xbf16> to vector<128x4xbf16>
    %13 = vector.extract_strided_slice %4 {offsets = [1, 1, 0], sizes = [8, 16, 4], strides = [1, 1, 1]} : vector<10x18x4xbf16> to vector<8x16x4xbf16>
    %14 = vector.shape_cast %13 : vector<8x16x4xbf16> to vector<128x4xbf16>
    %15 = vector.extract_strided_slice %4 {offsets = [1, 2, 0], sizes = [8, 16, 4], strides = [1, 1, 1]} : vector<10x18x4xbf16> to vector<8x16x4xbf16>
    %16 = vector.shape_cast %15 : vector<8x16x4xbf16> to vector<128x4xbf16>
    %17 = vector.extract_strided_slice %4 {offsets = [2, 0, 0], sizes = [8, 16, 4], strides = [1, 1, 1]} : vector<10x18x4xbf16> to vector<8x16x4xbf16>
    %18 = vector.shape_cast %17 : vector<8x16x4xbf16> to vector<128x4xbf16>
    %19 = vector.extract_strided_slice %4 {offsets = [2, 1, 0], sizes = [8, 16, 4], strides = [1, 1, 1]} : vector<10x18x4xbf16> to vector<8x16x4xbf16>
    %20 = vector.shape_cast %19 : vector<8x16x4xbf16> to vector<128x4xbf16>
    %21 = vector.extract_strided_slice %4 {offsets = [2, 2, 0], sizes = [8, 16, 4], strides = [1, 1, 1]} : vector<10x18x4xbf16> to vector<8x16x4xbf16>
    %22 = vector.shape_cast %21 : vector<8x16x4xbf16> to vector<128x4xbf16>
    %23 = tpu.concatenate %6, %8, %10, %12, %14, %16, %18, %20, %22 in 1 : vector<128x4xbf16>, vector<128x4xbf16>, vector<128x4xbf16>, vector<128x4xbf16>, vector<128x4xbf16>, vector<128x4xbf16>, vector<128x4xbf16>, vector<128x4xbf16>, vector<128x4xbf16> -> vector<128x36xbf16>
    %c0_2 = arith.constant 0 : index
    %c0_3 = arith.constant 0 : index
    %24 = vector.load %arg3[%c0_2, %c0_3] : memref<36x128xbf16, #tpu.memory_space<vmem>>, vector<36x128xbf16>
    %cst = arith.constant dense<0.000000e+00> : vector<128x128xf32>
    %25 = tpu.matmul %23, %24, %cst {dimension_numbers = #tpu.dot_dimension_numbers<[1], [0], [0], [1], [0, 0, 1, 1], [], []>} : vector<128x36xbf16>, vector<36x128xbf16>, vector<128x128xf32> -> vector<128x128xf32>
    %c0_4 = arith.constant 0 : index
    %c0_5 = arith.constant 0 : index
    %26 = vector.load %arg4[%c0_4, %c0_5] : memref<1x128xf32, #tpu.memory_space<vmem>>, vector<1x128xf32>
    %27 = vector.broadcast %26 : vector<1x128xf32> to vector<128x128xf32>
    %28 = arith.addf %25, %27 : vector<128x128xf32>
    %cst_6 = arith.constant 0.000000e+00 : f32
    %29 = vector.broadcast %cst_6 : f32 to vector<128x128xf32>
    %30 = arith.maximumf %28, %29 : vector<128x128xf32>
    %c0_7 = arith.constant 0 : index
    %c0_8 = arith.constant 0 : index
    %c0_9 = arith.constant 0 : index
    %31 = vector.load %arg5[%c0_7, %c0_8, %c0_9] : memref<1x128x128xf32, #tpu.memory_space<vmem>>, vector<1x128x128xf32>
    %32 = vector.shape_cast %31 : vector<1x128x128xf32> to vector<128x128xf32>
    %33 = vector.shape_cast %30 : vector<128x128xf32> to vector<1x128x128xf32>
    tpu.vector_store %arg5[%c0_7, %c0_8, %c0_9], %33 {strides = array<i32>} : memref<1x128x128xf32, #tpu.memory_space<vmem>>, vector<1x128x128xf32>,
    return
  }
  func.func @transform_0(%arg0: i32, %arg1: i32) -> (i32, i32, i32, i32) {
    %c0_i32 = arith.constant 0 : i32
    %c0_i32_0 = arith.constant 0 : i32
    %c0_i32_1 = arith.constant 0 : i32
    %c0_i32_2 = arith.constant 0 : i32
    return %arg0, %c0_i32, %c0_i32_0, %c0_i32_1 : i32, i32, i32, i32
  }
  func.func @transform_1(%arg0: i32, %arg1: i32) -> (i32, i32) {
    %c0_i32 = arith.constant 0 : i32
    %c0_i32_0 = arith.constant 0 : i32
    %c0_i32_1 = arith.constant 0 : i32
    return %c0_i32, %c0_i32_0 : i32, i32
  }
  func.func @transform_2(%arg0: i32, %arg1: i32) -> (i32, i32) {
    %c0_i32 = arith.constant 0 : i32
    %c0_i32_0 = arith.constant 0 : i32
    %c0_i32_1 = arith.constant 0 : i32
    return %c0_i32, %c0_i32_0 : i32, i32
  }
  func.func @transform_3(%arg0: i32, %arg1: i32) -> (i32, i32, i32) {
    %c0_i32 = arith.constant 0 : i32
    %c0_i32_0 = arith.constant 0 : i32
    return %arg0, %arg1, %c0_i32 : i32, i32, i32
  }
}

</mosaic_0001>

<llo_original>
// kernel: tpu_custom_call.1
$region0: #{tpu_custom_call.1}
  #allocation0 [shape = 'u32[]', space=smem, size = 0x4, offset = 0x4, fixed_abs, tag = 'smem constant byte address 0x4 - core index']
  #allocation1 [shape = 'u32[144,128]{1,0:T(1,128)}', space=vmem, size = 0x12000, scoped, tag = 'internal scratch']
  %s0 = inlined_call_operand.hbm [shape: bf16[2,18,18,4], index: 0, kind: input, shape index: {}]
  %s1 = inlined_call_operand.hbm [shape: bf16[36,128], index: 1, kind: input, shape index: {}]
  %s2 = inlined_call_operand.hbm [shape: f32[1,128], index: 2, kind: input, shape index: {}]
  %s3 = inlined_call_operand.hbm [shape: f32[2,256,128], index: 3, kind: output, shape index: {}]
  %s4 = sld [smem:[#allocation0]]
  $region57: #{tpu_custom_call.1} parent=0
    _
  %s6 = ssub.s32 1, %s4
  %s7 = scalar_select 0, %s6, %s4
  $region1: #{tpu_custom_call.1} parent=0
    #allocation2 [shape = 'u8[221184]{0}', space=vmem, size = 0x36000, scoped, tag = 'input window, operand 0']
    #allocation3 [shape = 's32[2]{0}', space=sflag, size = 0x8, scoped, tag = 'scoped memory for tpu_custom_call.1']
    #allocation4 [shape = 's32[2]{0}', space=sflag, size = 0x8, scoped, tag = 'scoped memory for tpu_custom_call.1']
    #allocation5 [shape = 'u8[10240]{0}', space=vmem, size = 0x2800, scoped, tag = 'input window, operand 1, single buffered']
    #allocation6 [shape = 's32[1]{0}', space=sflag, size = 0x4, scoped, tag = 'scoped memory for tpu_custom_call.1']
    #allocation7 [shape = 'u8[512]{0}', space=vmem, size = 0x400, scoped, tag = 'input window, operand 2, single buffered']
    #allocation8 [shape = 'u8[131072]{0}', space=vmem, size = 0x20000, scoped, tag = 'output window, operand 0']
    %8 = vsyncpa [#allocation3], 0
    %s9 = scalar_lea.sflag [#allocation3], 1
    %10 = vsyncpa %s9, 0
    %11 = vsyncpa [#allocation6], 0
    %12 = vsyncpa [#allocation4], 0
    %s13 = scalar_lea.sflag [#allocation4], 1
    %14 = vsyncpa %s13, 0
    loop: start=0, step=1, limit=6
    $region2: #{tpu_custom_call.1} parent=1 // loop_pre_header
      _
    $region3: #{tpu_custom_call.1} parent=1 // loop_header
      %s16 = sphi 0, %s20
      %p17 = scmp.ge.s32.totalorder %s16, 6
      %s23 = sphi 0, %s35
      %s24 = sphi 0, %s31
      %s25 = sphi 0, %s23
      %s26 = sphi 0, %s24
      %s27 = sphi 0, %s25
      %s28 = sphi 0, %s26
      %s38 = sphi 0, %s40
      %s41 = sphi 0, %s38
      %s42 = sphi 0, %s41
      %s58 = sphi 0, %s42
      %s62 = sphi 0, %s62
      %s64 = sphi 0, %s62
      %s65 = sphi 0, %s64
      %s79 = sphi 0, %s65
      %s83 = sphi 0, %s83
      %s85 = sphi 0, %s83
      %s86 = sphi 0, %s85
      %s100 = sphi 0, %s86
      %s108 = sphi 0, %s110
      %s111 = sphi 0, %s108
      %s112 = sphi 0, %s111
      %s128 = sphi 0, %s112
    $region4: #{tpu_custom_call.1} parent=1 // loop_header_branch
      %19 = sbr.rel (%p17) target = $region8
    $region5: #{tpu_custom_call.1} parent=1 // loop_body
      %s21 = ssub.s32 %s16, 1
      %s22 = ssub.s32 %s16, 2
      %s29 = sadd.s32 1, %s24
      %p30 = scmp.ge.s32.totalorder %s29, 2
      %s31 = scalar_select %p30, 0, %s29
      %s32 = sadd.s32 1, %s23
      %s33 = scalar_select %p30, %s32, %s23
      %p34 = scmp.ge.s32.totalorder %s33, 2
      %s35 = scalar_select %p34, 0, %s33
      %s36 = ssub.s32 %s23, %s35
      %p37 = scmp.eq.s32.totalorder %s36, 0
      %s39 = sadd.s32 %s38, 1
      %s40 = scalar_select %p37, %s38, %s39
      %p43 = pneg %p37
      %p44 = scmp.eq.s32.totalorder %s16, 3
      %p45 = por %p43, %p44
      %p46 = scmp.ne.s32.totalorder %s38, %s41
      %p47 = scmp.eq.s32.totalorder %s16, 0
      %p48 = por %p46, %p47
      %p49 = scmp.ne.s32.totalorder %s38, %s41
      %p50 = scmp.eq.s32.totalorder %s21, 3
      %p51 = por %p49, %p50
      %p52 = scmp.ne.s32.totalorder %s41, %s42
      %p53 = scmp.eq.s32.totalorder %s21, 0
      %p54 = por %p52, %p53
      %p55 = scmp.ne.s32.totalorder %s41, %s42
      %p56 = scmp.eq.s32.totalorder %s22, 3
      %p57 = por %p55, %p56
      %p59 = scmp.ne.s32.totalorder %s42, %s58
      %p60 = scmp.eq.s32.totalorder %s22, 0
      %p61 = por %p59, %p60
      %s63 = sadd.s32 %s62, 1
      %p66 = scmp.eq.s32.totalorder %s16, 3
      %p67 = scmp.ne.s32.totalorder %s62, %s64
      %p68 = scmp.eq.s32.totalorder %s16, 0
      %p69 = por %p67, %p68
      %p70 = scmp.ne.s32.totalorder %s62, %s64
      %p71 = scmp.eq.s32.totalorder %s21, 3
      %p72 = por %p70, %p71
      %p73 = scmp.ne.s32.totalorder %s64, %s65
      %p74 = scmp.eq.s32.totalorder %s21, 0
      %p75 = por %p73, %p74
      %p76 = scmp.ne.s32.totalorder %s64, %s65
      %p77 = scmp.eq.s32.totalorder %s22, 3
      %p78 = por %p76, %p77
      %p80 = scmp.ne.s32.totalorder %s65, %s79
      %p81 = scmp.eq.s32.totalorder %s22, 0
      %p82 = por %p80, %p81
      %s84 = sadd.s32 %s83, 1
      %p87 = scmp.eq.s32.totalorder %s16, 3
      %p88 = scmp.ne.s32.totalorder %s83, %s85
      %p89 = scmp.eq.s32.totalorder %s16, 0
      %p90 = por %p88, %p89
      %p91 = scmp.ne.s32.totalorder %s83, %s85
      %p92 = scmp.eq.s32.totalorder %s21, 3
      %p93 = por %p91, %p92
      %p94 = scmp.ne.s32.totalorder %s85, %s86
      %p95 = scmp.eq.s32.totalorder %s21, 0
      %p96 = por %p94, %p95
      %p97 = scmp.ne.s32.totalorder %s85, %s86
      %p98 = scmp.eq.s32.totalorder %s22, 3
      %p99 = por %p97, %p98
      %p101 = scmp.ne.s32.totalorder %s86, %s100
      %p102 = scmp.eq.s32.totalorder %s22, 0
      %p103 = por %p101, %p102
      %s104 = ssub.s32 %s23, %s35
      %s105 = ssub.s32 %s24, %s31
      %s106 = sor.u32 %s104, %s105
      %p107 = scmp.eq.s32.totalorder %s106, 0
      %s109 = sadd.s32 %s108, 1
      %s110 = scalar_select %p107, %s108, %s109
      %p113 = pneg %p107
      %p114 = scmp.eq.s32.totalorder %s16, 3
      %p115 = por %p113, %p114
      %p116 = scmp.ne.s32.totalorder %s108, %s111
      %p117 = scmp.eq.s32.totalorder %s16, 0
      %p118 = por %p116, %p117
      %p119 = scmp.ne.s32.totalorder %s108, %s111
      %p120 = scmp.eq.s32.totalorder %s21, 3
      %p121 = por %p119, %p120
      %p122 = scmp.ne.s32.totalorder %s111, %s112
      %p123 = scmp.eq.s32.totalorder %s21, 0
      %p124 = por %p122, %p123
      %p125 = scmp.ne.s32.totalorder %s111, %s112
      %p126 = scmp.eq.s32.totalorder %s22, 3
      %p127 = por %p125, %p126
      %p129 = scmp.ne.s32.totalorder %s112, %s128
      %p130 = scmp.eq.s32.totalorder %s22, 0
      %p131 = por %p129, %p130
      %p132 = scmp.le.s32.totalorder 1, %s16
      %p133 = scmp.lt.s32.totalorder %s16, 5
      %p134 = pnand %p132, %p133
      %p135 = pneg %p134
      // Predicated region
      $region9: #{tpu_custom_call.1} parent=5 // pred_check
        _
      $region10: #{tpu_custom_call.1} parent=5 // pred_check_branch
        %137 = sbr.rel (%p134) target = $region12
      $region11: #{tpu_custom_call.1} parent=5 // pred_region
        %s138 = ssub.s32 %s16, 1
        // Predicated region
        $region13: #{tpu_custom_call.1} parent=11 // pred_check
          %p139 = pneg %p75
        $region14: #{tpu_custom_call.1} parent=11 // pred_check_branch
          %141 = sbr.rel (%p139) target = $region16
        $region15: #{tpu_custom_call.1} parent=11 // pred_region
          %s143 = ssub.s32 320, 320
          %144 = vsyncadd [#allocation6], %s143
          %s145 = sshll.u32 [#allocation5], 4
          %s146 = int_to_ptr.vmem [resolvable:$true] %s145
          %151 = dma.hbm_to_vmem [thread:$0]  %s1, 320, %s146, [#allocation6], 64, 64, 4
        $region16: #{tpu_custom_call.1} parent=11 // pred_fallthru
          _
        // Predicated region
        $region17: #{tpu_custom_call.1} parent=11 // pred_check
          %p152 = pneg %p96
        $region18: #{tpu_custom_call.1} parent=11 // pred_check_branch
          %154 = sbr.rel (%p152) target = $region20
        $region19: #{tpu_custom_call.1} parent=11 // pred_region
          %s156 = ssub.s32 16, 16
          %157 = vsyncadd [#allocation6], %s156
          %s159 = sshll.u32 [#allocation7], 4
          %s160 = int_to_ptr.vmem [resolvable:$true] %s159
          %162 = dma.hbm_to_vmem [thread:$0]  %s2, 16, %s160, [#allocation6]
        $region20: #{tpu_custom_call.1} parent=11 // pred_fallthru
          _
      $region12: #{tpu_custom_call.1} parent=5 // pred_fallthru
        _
      %p163 = scmp.lt.s32.totalorder %s16, 4
      // Predicated region
      $region21: #{tpu_custom_call.1} parent=5 // pred_check
        %p164 = pneg %p163
      $region22: #{tpu_custom_call.1} parent=5 // pred_check_branch
        %166 = sbr.rel (%p164) target = $region24
      $region23: #{tpu_custom_call.1} parent=5 // pred_region
        // Predicated region
        $region25: #{tpu_custom_call.1} parent=23 // pred_check
          %p167 = pneg %p48
        $region26: #{tpu_custom_call.1} parent=23 // pred_check_branch
          %169 = sbr.rel (%p167) target = $region28
        $region27: #{tpu_custom_call.1} parent=23 // pred_region
          %s170 = sand.u32 %s38, 1
          %s171 = scalar_lea.sflag [#allocation3], %s170
          %s172 = sand.u32 %s38, 1
          %s173 = smul.addr %s172, 216
          %s174 = scalar_lea.vmem [#allocation2], %s173
          %s176 = ssub.s32 3456, 3456
          %177 = vsyncadd %s171, %s176
          %s178 = smul.addr %s23, 54
          %s179 = smul.addr %s178, 64
          %s180 = scalar_lea.hbm %s0, %s179
          %s181 = sshll.u32 %s174, 4
          %s182 = int_to_ptr.vmem [resolvable:$true] %s181
          %187 = dma.hbm_to_vmem [thread:$0]  %s180, 3456, %s182, %s171, 64, 64, 4
        $region28: #{tpu_custom_call.1} parent=23 // pred_fallthru
          _
      $region24: #{tpu_custom_call.1} parent=5 // pred_fallthru
        _
      %p188 = scmp.le.s32.totalorder 1, %s16
      %p189 = scmp.lt.s32.totalorder %s16, 5
      %p190 = pnand %p188, %p189
      %p191 = pneg %p190
      // Predicated region
      $region29: #{tpu_custom_call.1} parent=5 // pred_check
        _
      $region30: #{tpu_custom_call.1} parent=5 // pred_check_branch
        %193 = sbr.rel (%p190) target = $region32
      $region31: #{tpu_custom_call.1} parent=5 // pred_region
        %s194 = ssub.s32 %s16, 1
        %s195 = sand.u32 %s41, 1
        %s196 = scalar_lea.sflag [#allocation3], %s195
        %s197 = sand.u32 %s41, 1
        %s198 = smul.addr %s197, 216
        %s199 = scalar_lea.vmem [#allocation2], %s198
        // Predicated region
        $region33: #{tpu_custom_call.1} parent=31 // pred_check
          %p200 = pneg %p54
        $region34: #{tpu_custom_call.1} parent=31 // pred_check_branch
          %202 = sbr.rel (%p200) target = $region36
        $region35: #{tpu_custom_call.1} parent=31 // pred_region
          %203 = dma.done %s196, 3456
        $region36: #{tpu_custom_call.1} parent=31 // pred_fallthru
          _
        // Predicated region
        $region37: #{tpu_custom_call.1} parent=31 // pred_check
          %p204 = pneg %p75
        $region38: #{tpu_custom_call.1} parent=31 // pred_check_branch
          %206 = sbr.rel (%p204) target = $region40
        $region39: #{tpu_custom_call.1} parent=31 // pred_region
          %207 = dma.done [#allocation6], 320
        $region40: #{tpu_custom_call.1} parent=31 // pred_fallthru
          _
        // Predicated region
        $region41: #{tpu_custom_call.1} parent=31 // pred_check
          %p208 = pneg %p96
        $region42: #{tpu_custom_call.1} parent=31 // pred_check_branch
          %210 = sbr.rel (%p208) target = $region44
        $region43: #{tpu_custom_call.1} parent=31 // pred_region
          %211 = dma.done [#allocation6], 16
        $region44: #{tpu_custom_call.1} parent=31 // pred_fallthru
          _
        %s212 = sand.u32 %s41, 1
        %s213 = scalar_lea.sflag [#allocation3], %s212
        %s214 = sand.u32 %s41, 1
        %s215 = smul.addr %s214, 216
        %s216 = scalar_lea.vmem [#allocation2], %s215
        %p217 = pneg %p54
        %p218 = pneg %p51
        %p219 = pneg %p75
        %p220 = pneg %p72
        %p221 = pneg %p96
        %p222 = pneg %p93
        %p223 = pneg %p124
        %p224 = pneg %p121
        %s225 = sand.u32 %s111, 1
        %s226 = scalar_lea.sflag [#allocation4], %s225
        %s227 = sand.u32 %s111, 1
        %s228 = smul.addr %s227, 128
        %s229 = scalar_lea.vmem [#allocation8], %s228
        %s230 = smul.u32 16, %s26
        %s232 = smul.u32 %s26, 8
        %s233 = smul.u32 %s232, 3
        %s234 = smul.addr %s233, 4
        %s235 = scalar_lea.vmem %s199, %s234 [#allocation2]
        %v236 = vld [vmem:[%s235] sm:$0xf]
        %v237 = vld [vmem:[%s235 + $0x4] sm:$0xf]
        %v238 = vld [vmem:[%s235 + $0x8] sm:$0x1]
        %v239 = vld [vmem:[%s235 + $0xc] sm:$0xf]
        %v240 = vld [vmem:[%s235 + $0x10] sm:$0xf]
        %v241 = vld [vmem:[%s235 + $0x14] sm:$0x1]
        %v242 = vld [vmem:[%s235 + $0x18] sm:$0xf]
        %v243 = vld [vmem:[%s235 + $0x1c] sm:$0xf]
        %v244 = vld [vmem:[%s235 + $0x20] sm:$0x1]
        %v245 = vld [vmem:[%s235 + $0x24] sm:$0xf]
        %v246 = vld [vmem:[%s235 + $0x28] sm:$0xf]
        %v247 = vld [vmem:[%s235 + $0x2c] sm:$0x1]
        %v248 = vld [vmem:[%s235 + $0x30] sm:$0xf]
        %v249 = vld [vmem:[%s235 + $0x34] sm:$0xf]
        %v250 = vld [vmem:[%s235 + $0x38] sm:$0x1]
        %v251 = vld [vmem:[%s235 + $0x3c] sm:$0xf]
        %v252 = vld [vmem:[%s235 + $0x40] sm:$0xf]
        %v253 = vld [vmem:[%s235 + $0x44] sm:$0x1]
        %v254 = vld [vmem:[%s235 + $0x48] sm:$0xf]
        %v255 = vld [vmem:[%s235 + $0x4c] sm:$0xf]
        %v256 = vld [vmem:[%s235 + $0x50] sm:$0x1]
        %v257 = vld [vmem:[%s235 + $0x54] sm:$0xf]
        %v258 = vld [vmem:[%s235 + $0x58] sm:$0xf]
        %v259 = vld [vmem:[%s235 + $0x5c] sm:$0x1]
        %v260 = vld [vmem:[%s235 + $0x60] sm:$0xf]
        %v261 = vld [vmem:[%s235 + $0x64] sm:$0xf]
        %v262 = vld [vmem:[%s235 + $0x68] sm:$0x1]
        %v263 = vld [vmem:[%s235 + $0x6c] sm:$0xf]
        %v264 = vld [vmem:[%s235 + $0x70] sm:$0xf]
        %v265 = vld [vmem:[%s235 + $0x74] sm:$0x1]
        %vm266 = vsmask.f32 3328
        %vm267 = vsmask.f32 7440
        %vm268 = vmor %vm266, %vm267
        %v270 = vshrl.u32 %v236, 16
        %v272 = vrot.slane %v270, 4
        %v273 = vshll.u32 %v236, 16
        %v275 = vrot.slane %v273, 5
        %v276 = vor.u32 %v272, %v275
        %v277 = vrot.slane %v276, 4
        %v279 = vshll.u32 %v237, 16
        %v281 = vrot.slane %v279, 5
        %v282 = vsel %vm268, %v277, %v281
        %v283 = vshrl.u32 %v237, 16
        %v285 = vrot.slane %v283, 4
        %v286 = vor.u32 %v285, %v281
        %v287 = vrot.slane %v286, 4
        %v289 = vshll.u32 %v238, 16
        %v291 = vrot.slane %v289, 5
        %v292 = vsel %vm268, %v287, %v291
        %v294 = vshrl.u32 %v239, 16
        %v296 = vrot.slane %v294, 4
        %v297 = vshll.u32 %v239, 16
        %v299 = vrot.slane %v297, 5
        %v300 = vor.u32 %v296, %v299
        %v301 = vrot.slane %v300, 4
        %v303 = vshll.u32 %v240, 16
        %v305 = vrot.slane %v303, 5
        %v306 = vsel %vm268, %v301, %v305
        %v307 = vshrl.u32 %v240, 16
        %v309 = vrot.slane %v307, 4
        %v310 = vor.u32 %v309, %v305
        %v311 = vrot.slane %v310, 4
        %v313 = vshll.u32 %v241, 16
        %v315 = vrot.slane %v313, 5
        %v316 = vsel %vm268, %v311, %v315
        %v318 = vshrl.u32 %v242, 16
        %v320 = vrot.slane %v318, 4
        %v321 = vshll.u32 %v242, 16
        %v323 = vrot.slane %v321, 5
        %v324 = vor.u32 %v320, %v323
        %v325 = vrot.slane %v324, 4
        %v327 = vshll.u32 %v243, 16
        %v329 = vrot.slane %v327, 5
        %v330 = vsel %vm268, %v325, %v329
        %v331 = vshrl.u32 %v243, 16
        %v333 = vrot.slane %v331, 4
        %v334 = vor.u32 %v333, %v329
        %v335 = vrot.slane %v334, 4
        %v337 = vshll.u32 %v244, 16
        %v339 = vrot.slane %v337, 5
        %v340 = vsel %vm268, %v335, %v339
        %v342 = vshrl.u32 %v245, 16
        %v344 = vrot.slane %v342, 4
        %v345 = vshll.u32 %v245, 16
        %v347 = vrot.slane %v345, 5
        %v348 = vor.u32 %v344, %v347
        %v349 = vrot.slane %v348, 4
        %v351 = vshll.u32 %v246, 16
        %v353 = vrot.slane %v351, 5
        %v354 = vsel %vm268, %v349, %v353
        %v355 = vshrl.u32 %v246, 16
        %v357 = vrot.slane %v355, 4
        %v358 = vor.u32 %v357, %v353
        %v359 = vrot.slane %v358, 4
        %v361 = vshll.u32 %v247, 16
        %v363 = vrot.slane %v361, 5
        %v364 = vsel %vm268, %v359, %v363
        %v366 = vshrl.u32 %v248, 16
        %v368 = vrot.slane %v366, 4
        %v369 = vshll.u32 %v248, 16
        %v371 = vrot.slane %v369, 5
        %v372 = vor.u32 %v368, %v371
        %v373 = vrot.slane %v372, 4
        %v375 = vshll.u32 %v249, 16
        %v377 = vrot.slane %v375, 5
        %v378 = vsel %vm268, %v373, %v377
        %v379 = vshrl.u32 %v249, 16
        %v381 = vrot.slane %v379, 4
        %v382 = vor.u32 %v381, %v377
        %v383 = vrot.slane %v382, 4
        %v385 = vshll.u32 %v250, 16
        %v387 = vrot.slane %v385, 5
        %v388 = vsel %vm268, %v383, %v387
        %v390 = vshrl.u32 %v251, 16
        %v392 = vrot.slane %v390, 4
        %v393 = vshll.u32 %v251, 16
        %v395 = vrot.slane %v393, 5
        %v396 = vor.u32 %v392, %v395
        %v397 = vrot.slane %v396, 4
        %v399 = vshll.u32 %v252, 16
        %v401 = vrot.slane %v399, 5
        %v402 = vsel %vm268, %v397, %v401
        %v403 = vshrl.u32 %v252, 16
        %v405 = vrot.slane %v403, 4
        %v406 = vor.u32 %v405, %v401
        %v407 = vrot.slane %v406, 4
        %v409 = vshll.u32 %v253, 16
        %v411 = vrot.slane %v409, 5
        %v412 = vsel %vm268, %v407, %v411
        %v414 = vshrl.u32 %v254, 16
        %v416 = vrot.slane %v414, 4
        %v417 = vshll.u32 %v254, 16
        %v419 = vrot.slane %v417, 5
        %v420 = vor.u32 %v416, %v419
        %v421 = vrot.slane %v420, 4
        %v423 = vshll.u32 %v255, 16
        %v425 = vrot.slane %v423, 5
        %v426 = vsel %vm268, %v421, %v425
        %v427 = vshrl.u32 %v255, 16
        %v429 = vrot.slane %v427, 4
        %v430 = vor.u32 %v429, %v425
        %v431 = vrot.slane %v430, 4
        %v433 = vshll.u32 %v256, 16
        %v435 = vrot.slane %v433, 5
        %v436 = vsel %vm268, %v431, %v435
        %v438 = vshrl.u32 %v257, 16
        %v440 = vrot.slane %v438, 4
        %v441 = vshll.u32 %v257, 16
        %v443 = vrot.slane %v441, 5
        %v444 = vor.u32 %v440, %v443
        %v445 = vrot.slane %v444, 4
        %v447 = vshll.u32 %v258, 16
        %v449 = vrot.slane %v447, 5
        %v450 = vsel %vm268, %v445, %v449
        %v451 = vshrl.u32 %v258, 16
        %v453 = vrot.slane %v451, 4
        %v454 = vor.u32 %v453, %v449
        %v455 = vrot.slane %v454, 4
        %v457 = vshll.u32 %v259, 16
        %v459 = vrot.slane %v457, 5
        %v460 = vsel %vm268, %v455, %v459
        %vm485 = vcmask 1042432
        %vm486 = vcmask 1046532
        %vm487 = vmor %vm485, %vm486
        %v488 = vrot.slane %v236, 5
        %v489 = vrot.slane %v488, 4
        %v490 = vrot.slane %v237, 5
        %v491 = vsel %vm487, %v489, %v490
        %v492 = vrot.slane %v490, 4
        %v493 = vrot.slane %v238, 5
        %v494 = vsel %vm487, %v492, %v493
        %v495 = vrot.slane %v239, 5
        %v496 = vrot.slane %v495, 4
        %v497 = vrot.slane %v240, 5
        %v498 = vsel %vm487, %v496, %v497
        %v499 = vrot.slane %v497, 4
        %v500 = vrot.slane %v241, 5
        %v501 = vsel %vm487, %v499, %v500
        %v502 = vrot.slane %v242, 5
        %v503 = vrot.slane %v502, 4
        %v504 = vrot.slane %v243, 5
        %v505 = vsel %vm487, %v503, %v504
        %v506 = vrot.slane %v504, 4
        %v507 = vrot.slane %v244, 5
        %v508 = vsel %vm487, %v506, %v507
        %v509 = vrot.slane %v245, 5
        %v510 = vrot.slane %v509, 4
        %v511 = vrot.slane %v246, 5
        %v512 = vsel %vm487, %v510, %v511
        %v513 = vrot.slane %v511, 4
        %v514 = vrot.slane %v247, 5
        %v515 = vsel %vm487, %v513, %v514
        %v516 = vrot.slane %v248, 5
        %v517 = vrot.slane %v516, 4
        %v518 = vrot.slane %v249, 5
        %v519 = vsel %vm487, %v517, %v518
        %v520 = vrot.slane %v518, 4
        %v521 = vrot.slane %v250, 5
        %v522 = vsel %vm487, %v520, %v521
        %v523 = vrot.slane %v251, 5
        %v524 = vrot.slane %v523, 4
        %v525 = vrot.slane %v252, 5
        %v526 = vsel %vm487, %v524, %v525
        %v527 = vrot.slane %v525, 4
        %v528 = vrot.slane %v253, 5
        %v529 = vsel %vm487, %v527, %v528
        %v530 = vrot.slane %v254, 5
        %v531 = vrot.slane %v530, 4
        %v532 = vrot.slane %v255, 5
        %v533 = vsel %vm487, %v531, %v532
        %v534 = vrot.slane %v532, 4
        %v535 = vrot.slane %v256, 5
        %v536 = vsel %vm487, %v534, %v535
        %v537 = vrot.slane %v257, 5
        %v538 = vrot.slane %v537, 4
        %v539 = vrot.slane %v258, 5
        %v540 = vsel %vm487, %v538, %v539
        %v541 = vrot.slane %v539, 4
        %v542 = vrot.slane %v259, 5
        %v543 = vsel %vm487, %v541, %v542
        %v545 = vshrl.u32 %v260, 16
        %v547 = vrot.slane %v545, 4
        %v548 = vshll.u32 %v260, 16
        %v550 = vrot.slane %v548, 5
        %v551 = vor.u32 %v547, %v550
        %v552 = vrot.slane %v551, 4
        %v554 = vshll.u32 %v261, 16
        %v556 = vrot.slane %v554, 5
        %v557 = vsel %vm268, %v552, %v556
        %v558 = vshrl.u32 %v261, 16
        %v560 = vrot.slane %v558, 4
        %v561 = vor.u32 %v560, %v556
        %v562 = vrot.slane %v561, 4
        %v564 = vshll.u32 %v262, 16
        %v566 = vrot.slane %v564, 5
        %v567 = vsel %vm268, %v562, %v566
        %v571 = vrot.slane %v260, 5
        %v572 = vrot.slane %v571, 4
        %v573 = vrot.slane %v261, 5
        %v574 = vsel %vm487, %v572, %v573
        %v575 = vrot.slane %v573, 4
        %v576 = vrot.slane %v262, 5
        %v577 = vsel %vm487, %v575, %v576
        %v579 = vshrl.u32 %v263, 16
        %v581 = vrot.slane %v579, 4
        %v582 = vshll.u32 %v263, 16
        %v584 = vrot.slane %v582, 5
        %v585 = vor.u32 %v581, %v584
        %v586 = vrot.slane %v585, 4
        %v588 = vshll.u32 %v264, 16
        %v590 = vrot.slane %v588, 5
        %v591 = vsel %vm268, %v586, %v590
        %v592 = vshrl.u32 %v264, 16
        %v594 = vrot.slane %v592, 4
        %v595 = vor.u32 %v594, %v590
        %v596 = vrot.slane %v595, 4
        %v598 = vshll.u32 %v265, 16
        %v600 = vrot.slane %v598, 5
        %v601 = vsel %vm268, %v596, %v600
        %v605 = vrot.slane %v263, 5
        %v606 = vrot.slane %v605, 4
        %v607 = vrot.slane %v264, 5
        %v608 = vsel %vm487, %v606, %v607
        %v609 = vrot.slane %v607, 4
        %v610 = vrot.slane %v265, 5
        %v611 = vsel %vm487, %v609, %v610
        %v612 = vunpack.c.l.b16 %v236
        %v613 = vunpack.c.l.b16 %v237
        %v614 = vunpack.c.l.b16 %v239
        %v615 = vunpack.c.l.b16 %v240
        %v616 = vunpack.c.l.b16 %v242
        %v617 = vunpack.c.l.b16 %v243
        %v618 = vunpack.c.l.b16 %v245
        %v619 = vunpack.c.l.b16 %v246
        %v620 = vunpack.c.l.b16 %v248
        %v621 = vunpack.c.l.b16 %v249
        %v622 = vunpack.c.l.b16 %v251
        %v623 = vunpack.c.l.b16 %v252
        %v624 = vunpack.c.l.b16 %v254
        %v625 = vunpack.c.l.b16 %v255
        %v626 = vunpack.c.l.b16 %v257
        %v627 = vunpack.c.l.b16 %v258
        %v628 = vpack.c.b16 %v613, %v612
        %v629 = vpack.c.b16 %v615, %v614
        %v630 = vpack.c.b16 %v617, %v616
        %v631 = vpack.c.b16 %v619, %v618
        %v632 = vpack.c.b16 %v621, %v620
        %v633 = vpack.c.b16 %v623, %v622
        %v634 = vpack.c.b16 %v625, %v624
        %v635 = vpack.c.b16 %v627, %v626
        %v636 = vunpack.c.l.b16 %v282
        %v637 = vunpack.c.l.b16 %v292
        %v638 = vunpack.c.l.b16 %v306
        %v639 = vunpack.c.l.b16 %v316
        %v640 = vunpack.c.l.b16 %v330
        %v641 = vunpack.c.l.b16 %v340
        %v642 = vunpack.c.l.b16 %v354
        %v643 = vunpack.c.l.b16 %v364
        %v644 = vunpack.c.l.b16 %v378
        %v645 = vunpack.c.l.b16 %v388
        %v646 = vunpack.c.l.b16 %v402
        %v647 = vunpack.c.l.b16 %v412
        %v648 = vunpack.c.l.b16 %v426
        %v649 = vunpack.c.l.b16 %v436
        %v650 = vunpack.c.l.b16 %v450
        %v651 = vunpack.c.l.b16 %v460
        %v652 = vpack.c.b16 %v637, %v636
        %v653 = vpack.c.b16 %v639, %v638
        %v654 = vpack.c.b16 %v641, %v640
        %v655 = vpack.c.b16 %v643, %v642
        %v656 = vpack.c.b16 %v645, %v644
        %v657 = vpack.c.b16 %v647, %v646
        %v658 = vpack.c.b16 %v649, %v648
        %v659 = vpack.c.b16 %v651, %v650
        %660 = vrot.lane.b32.xlu0 %v652, 4
        %v661 = vpop.permute.xlu0 %660
        %662 = vrot.lane.b32.xlu0 %v653, 4
        %v663 = vpop.permute.xlu0 %662
        %664 = vrot.lane.b32.xlu0 %v654, 4
        %v665 = vpop.permute.xlu0 %664
        %666 = vrot.lane.b32.xlu0 %v655, 4
        %v667 = vpop.permute.xlu0 %666
        %668 = vrot.lane.b32.xlu0 %v656, 4
        %v669 = vpop.permute.xlu0 %668
        %670 = vrot.lane.b32.xlu0 %v657, 4
        %v671 = vpop.permute.xlu0 %670
        %672 = vrot.lane.b32.xlu0 %v658, 4
        %v673 = vpop.permute.xlu0 %672
        %674 = vrot.lane.b32.xlu0 %v659, 4
        %v675 = vpop.permute.xlu0 %674
        %v676 = vunpack.c.l.b16 %v491
        %v677 = vunpack.c.l.b16 %v494
        %v678 = vunpack.c.l.b16 %v498
        %v679 = vunpack.c.l.b16 %v501
        %v680 = vunpack.c.l.b16 %v505
        %v681 = vunpack.c.l.b16 %v508
        %v682 = vunpack.c.l.b16 %v512
        %v683 = vunpack.c.l.b16 %v515
        %v684 = vunpack.c.l.b16 %v519
        %v685 = vunpack.c.l.b16 %v522
        %v686 = vunpack.c.l.b16 %v526
        %v687 = vunpack.c.l.b16 %v529
        %v688 = vunpack.c.l.b16 %v533
        %v689 = vunpack.c.l.b16 %v536
        %v690 = vunpack.c.l.b16 %v540
        %v691 = vunpack.c.l.b16 %v543
        %v692 = vpack.c.b16 %v677, %v676
        %v693 = vpack.c.b16 %v679, %v678
        %v694 = vpack.c.b16 %v681, %v680
        %v695 = vpack.c.b16 %v683, %v682
        %v696 = vpack.c.b16 %v685, %v684
        %v697 = vpack.c.b16 %v687, %v686
        %v698 = vpack.c.b16 %v689, %v688
        %v699 = vpack.c.b16 %v691, %v690
        %700 = vrot.lane.b32.xlu0 %v692, 8
        %v701 = vpop.permute.xlu0 %700
        %702 = vrot.lane.b32.xlu0 %v693, 8
        %v703 = vpop.permute.xlu0 %702
        %704 = vrot.lane.b32.xlu0 %v694, 8
        %v705 = vpop.permute.xlu0 %704
        %706 = vrot.lane.b32.xlu0 %v695, 8
        %v707 = vpop.permute.xlu0 %706
        %708 = vrot.lane.b32.xlu0 %v696, 8
        %v709 = vpop.permute.xlu0 %708
        %710 = vrot.lane.b32.xlu0 %v697, 8
        %v711 = vpop.permute.xlu0 %710
        %712 = vrot.lane.b32.xlu0 %v698, 8
        %v713 = vpop.permute.xlu0 %712
        %714 = vrot.lane.b32.xlu0 %v699, 8
        %v715 = vpop.permute.xlu0 %714
        %v716 = vunpack.c.l.b16 %v260
        %v717 = vunpack.c.l.b16 %v261
        %v718 = vpack.c.b16 %v717, %v716
        %719 = vrot.lane.b32.xlu0 %v629, 12
        %v720 = vpop.permute.xlu0 %719
        %721 = vrot.lane.b32.xlu0 %v630, 12
        %v722 = vpop.permute.xlu0 %721
        %723 = vrot.lane.b32.xlu0 %v631, 12
        %v724 = vpop.permute.xlu0 %723
        %725 = vrot.lane.b32.xlu0 %v632, 12
        %v726 = vpop.permute.xlu0 %725
        %727 = vrot.lane.b32.xlu0 %v633, 12
        %v728 = vpop.permute.xlu0 %727
        %729 = vrot.lane.b32.xlu0 %v634, 12
        %v730 = vpop.permute.xlu0 %729
        %731 = vrot.lane.b32.xlu0 %v635, 12
        %v732 = vpop.permute.xlu0 %731
        %733 = vrot.lane.b32.xlu0 %v718, 12
        %v734 = vpop.permute.xlu0 %733
        %v735 = vunpack.c.l.b16 %v557
        %v736 = vunpack.c.l.b16 %v567
        %v737 = vpack.c.b16 %v736, %v735
        %738 = vrot.lane.b32.xlu0 %v653, 16
        %v739 = vpop.permute.xlu0 %738
        %740 = vrot.lane.b32.xlu0 %v654, 16
        %v741 = vpop.permute.xlu0 %740
        %742 = vrot.lane.b32.xlu0 %v655, 16
        %v743 = vpop.permute.xlu0 %742
        %744 = vrot.lane.b32.xlu0 %v656, 16
        %v745 = vpop.permute.xlu0 %744
        %746 = vrot.lane.b32.xlu0 %v657, 16
        %v747 = vpop.permute.xlu0 %746
        %748 = vrot.lane.b32.xlu0 %v658, 16
        %v749 = vpop.permute.xlu0 %748
        %750 = vrot.lane.b32.xlu0 %v659, 16
        %v751 = vpop.permute.xlu0 %750
        %752 = vrot.lane.b32.xlu0 %v737, 16
        %v753 = vpop.permute.xlu0 %752
        %v754 = vunpack.c.l.b16 %v574
        %v755 = vunpack.c.l.b16 %v577
        %v756 = vpack.c.b16 %v755, %v754
        %757 = vrot.lane.b32.xlu0 %v693, 20
        %v758 = vpop.permute.xlu0 %757
        %759 = vrot.lane.b32.xlu0 %v694, 20
        %v760 = vpop.permute.xlu0 %759
        %761 = vrot.lane.b32.xlu0 %v695, 20
        %v762 = vpop.permute.xlu0 %761
        %763 = vrot.lane.b32.xlu0 %v696, 20
        %v764 = vpop.permute.xlu0 %763
        %765 = vrot.lane.b32.xlu0 %v697, 20
        %v766 = vpop.permute.xlu0 %765
        %767 = vrot.lane.b32.xlu0 %v698, 20
        %v768 = vpop.permute.xlu0 %767
        %769 = vrot.lane.b32.xlu0 %v699, 20
        %v770 = vpop.permute.xlu0 %769
        %771 = vrot.lane.b32.xlu0 %v756, 20
        %v772 = vpop.permute.xlu0 %771
        %v773 = vunpack.c.l.b16 %v263
        %v774 = vunpack.c.l.b16 %v264
        %v775 = vpack.c.b16 %v774, %v773
        %776 = vrot.lane.b32.xlu0 %v630, 24
        %v777 = vpop.permute.xlu0 %776
        %778 = vrot.lane.b32.xlu0 %v631, 24
        %v779 = vpop.permute.xlu0 %778
        %780 = vrot.lane.b32.xlu0 %v632, 24
        %v781 = vpop.permute.xlu0 %780
        %782 = vrot.lane.b32.xlu0 %v633, 24
        %v783 = vpop.permute.xlu0 %782
        %784 = vrot.lane.b32.xlu0 %v634, 24
        %v785 = vpop.permute.xlu0 %784
        %786 = vrot.lane.b32.xlu0 %v635, 24
        %v787 = vpop.permute.xlu0 %786
        %788 = vrot.lane.b32.xlu0 %v718, 24
        %v789 = vpop.permute.xlu0 %788
        %790 = vrot.lane.b32.xlu0 %v775, 24
        %v791 = vpop.permute.xlu0 %790
        %v792 = vunpack.c.l.b16 %v591
        %v793 = vunpack.c.l.b16 %v601
        %v794 = vpack.c.b16 %v793, %v792
        %795 = vrot.lane.b32.xlu0 %v654, 28
        %v796 = vpop.permute.xlu0 %795
        %797 = vrot.lane.b32.xlu0 %v655, 28
        %v798 = vpop.permute.xlu0 %797
        %799 = vrot.lane.b32.xlu0 %v656, 28
        %v800 = vpop.permute.xlu0 %799
        %801 = vrot.lane.b32.xlu0 %v657, 28
        %v802 = vpop.permute.xlu0 %801
        %803 = vrot.lane.b32.xlu0 %v658, 28
        %v804 = vpop.permute.xlu0 %803
        %805 = vrot.lane.b32.xlu0 %v659, 28
        %v806 = vpop.permute.xlu0 %805
        %807 = vrot.lane.b32.xlu0 %v737, 28
        %v808 = vpop.permute.xlu0 %807
        %809 = vrot.lane.b32.xlu0 %v794, 28
        %v810 = vpop.permute.xlu0 %809
        %v811 = vunpack.c.l.b16 %v608
        %v812 = vunpack.c.l.b16 %v611
        %v813 = vpack.c.b16 %v812, %v811
        %814 = vrot.lane.b32.xlu0 %v694, 32
        %v815 = vpop.permute.xlu0 %814
        %816 = vrot.lane.b32.xlu0 %v695, 32
        %v817 = vpop.permute.xlu0 %816
        %818 = vrot.lane.b32.xlu0 %v696, 32
        %v819 = vpop.permute.xlu0 %818
        %820 = vrot.lane.b32.xlu0 %v697, 32
        %v821 = vpop.permute.xlu0 %820
        %822 = vrot.lane.b32.xlu0 %v698, 32
        %v823 = vpop.permute.xlu0 %822
        %824 = vrot.lane.b32.xlu0 %v699, 32
        %v825 = vpop.permute.xlu0 %824
        %826 = vrot.lane.b32.xlu0 %v756, 32
        %v827 = vpop.permute.xlu0 %826
        %828 = vrot.lane.b32.xlu0 %v813, 32
        %v829 = vpop.permute.xlu0 %828
        %vm830 = vcmask 31744
        %v833 = vsel %vm830, %v628, %v661
        %v836 = vsel %vm830, %v629, %v663
        %v839 = vsel %vm830, %v630, %v665
        %v842 = vsel %vm830, %v631, %v667
        %v845 = vsel %vm830, %v632, %v669
        %v848 = vsel %vm830, %v633, %v671
        %v851 = vsel %vm830, %v634, %v673
        %v854 = vsel %vm830, %v635, %v675
        %vm855 = vcmask 64512
        %v857 = vsel %vm855, %v833, %v701
        %v859 = vsel %vm855, %v836, %v703
        %v861 = vsel %vm855, %v839, %v705
        %v863 = vsel %vm855, %v842, %v707
        %v865 = vsel %vm855, %v845, %v709
        %v867 = vsel %vm855, %v848, %v711
        %v869 = vsel %vm855, %v851, %v713
        %v871 = vsel %vm855, %v854, %v715
        %vm872 = vcmask 97280
        %v874 = vsel %vm872, %v857, %v720
        %v876 = vsel %vm872, %v859, %v722
        %v878 = vsel %vm872, %v861, %v724
        %v880 = vsel %vm872, %v863, %v726
        %v882 = vsel %vm872, %v865, %v728
        %v884 = vsel %vm872, %v867, %v730
        %v886 = vsel %vm872, %v869, %v732
        %v888 = vsel %vm872, %v871, %v734
        %vm889 = vcmask 130048
        %v891 = vsel %vm889, %v874, %v739
        %v893 = vsel %vm889, %v876, %v741
        %v895 = vsel %vm889, %v878, %v743
        %v897 = vsel %vm889, %v880, %v745
        %v899 = vsel %vm889, %v882, %v747
        %v901 = vsel %vm889, %v884, %v749
        %v903 = vsel %vm889, %v886, %v751
        %v905 = vsel %vm889, %v888, %v753
        %vm906 = vcmask 162816
        %v908 = vsel %vm906, %v891, %v758
        %v910 = vsel %vm906, %v893, %v760
        %v912 = vsel %vm906, %v895, %v762
        %v914 = vsel %vm906, %v897, %v764
        %v916 = vsel %vm906, %v899, %v766
        %v918 = vsel %vm906, %v901, %v768
        %v920 = vsel %vm906, %v903, %v770
        %v922 = vsel %vm906, %v905, %v772
        %vm923 = vcmask 195584
        %v925 = vsel %vm923, %v908, %v777
        %v927 = vsel %vm923, %v910, %v779
        %v929 = vsel %vm923, %v912, %v781
        %v931 = vsel %vm923, %v914, %v783
        %v933 = vsel %vm923, %v916, %v785
        %v935 = vsel %vm923, %v918, %v787
        %v937 = vsel %vm923, %v920, %v789
        %v939 = vsel %vm923, %v922, %v791
        %vm940 = vcmask 228352
        %v942 = vsel %vm940, %v925, %v796
        %v944 = vsel %vm940, %v927, %v798
        %v946 = vsel %vm940, %v929, %v800
        %v948 = vsel %vm940, %v931, %v802
        %v950 = vsel %vm940, %v933, %v804
        %v952 = vsel %vm940, %v935, %v806
        %v954 = vsel %vm940, %v937, %v808
        %v956 = vsel %vm940, %v939, %v810
        %vm957 = vcmask 261120
        %v959 = vsel %vm957, %v942, %v815
        %v961 = vsel %vm957, %v944, %v817
        %v963 = vsel %vm957, %v946, %v819
        %v965 = vsel %vm957, %v948, %v821
        %v967 = vsel %vm957, %v950, %v823
        %v969 = vsel %vm957, %v952, %v825
        %v971 = vsel %vm957, %v954, %v827
        %v973 = vsel %vm957, %v956, %v829
        %v974 = vld [vmem:[#allocation5] sm:$0xf]
        %v975 = vld [vmem:[#allocation5 + $0x4] sm:$0xf]
        %v976 = vld [vmem:[#allocation5 + $0x8] sm:$0xf]
        %v977 = vld [vmem:[#allocation5 + $0xc] sm:$0xf]
        %v978 = vld [vmem:[#allocation5 + $0x10] sm:$0x3]
        %v979 = vld [vmem:[#allocation7] sm:$0x1]
        %v981 = vlaneseq
        %v982 = vshrl.u32 %v981, 7
        %v983 = vsub.s32 0, %v982
        %v984 = vrot.slane %v979, %v983
        %v991 = vunpack.c.l.b16 %v974
        %v992 = vunpack.c.l.b16 %v975
        %v993 = vunpack.c.l.b16 %v976
        %v994 = vunpack.c.l.b16 %v977
        %v995 = vunpack.c.l.b16 %v978
        %v996 = vpack.c.b16 %v992, %v991
        %v997 = vpack.c.b16 %v994, %v993
        %v998 = vpack.c.b16 %v995, %v995
        %vm1001 = vcmask 293888
        %v1002 = vsel %vm1001, %v959, 0
        %v1004 = vsel %vm1001, %v961, 0
        %v1006 = vsel %vm1001, %v963, 0
        %v1008 = vsel %vm1001, %v965, 0
        %v1010 = vsel %vm1001, %v967, 0
        %v1012 = vsel %vm1001, %v969, 0
        %v1014 = vsel %vm1001, %v971, 0
        %v1016 = vsel %vm1001, %v973, 0
        %vm1018 = vcmask 1041408
        %v1020 = vsel %vm1018, %v998, 0
        %1022 = vmatprep.subr.bf16.mxu0 0
        %1023 = vmatpush1.bf16.msra.mxu0 %v996
        %1024 = vmatprep.subr.bf16.mxu0 0
        %1025 = vmatpush1.bf16.msra.mxu0 %v997
        %1026 = vmatprep.subr.bf16.mxu0 0
        %1027 = vmatpush1.bf16.msra.mxu0 %v1020
        %1028 = vmatprep.subr.bf16.mxu0 0
        %1029 = vmatpush1.bf16.msra.mxu0 0
        %1030 = vmatprep.subr.bf16.mxu0 0
        %1031 = vmatpush1.bf16.msra.mxu0 0
        %1032 = vmatprep.subr.bf16.mxu0 0
        %1033 = vmatpush1.bf16.msra.mxu0 0
        %1034 = vmatprep.subr.bf16.mxu0 0
        %1035 = vmatpush1.bf16.msra.mxu0 0
        %1036 = vmatprep.subr.bf16.mxu0 0
        %1037 = vmatpush1.bf16.msra.mxu0 0
        %1038 = vmatprep.subr.bf16.mxu0 0
        %1039 = vmatpush1.bf16.msra.mxu0 0
        %1040 = vmatprep.subr.bf16.mxu0 0
        %1041 = vmatpush1.bf16.msra.mxu0 0
        %1042 = vmatprep.subr.bf16.mxu0 0
        %1043 = vmatpush1.bf16.msra.mxu0 0
        %1044 = vmatprep.subr.bf16.mxu0 0
        %1045 = vmatpush1.bf16.msra.mxu0 0
        %1046 = vmatprep.subr.bf16.mxu0 0
        %1047 = vmatpush1.bf16.msra.mxu0 0
        %1048 = vmatprep.subr.bf16.mxu0 0
        %1049 = vmatpush1.bf16.msra.mxu0 0
        %1050 = vmatprep.subr.bf16.mxu0 0
        %1051 = vmatpush1.bf16.msra.mxu0 0
        %1052 = vmatprep.subr.bf16.mxu0 0
        %1053 = vmatpush1.bf16.msra.mxu0 0
        %1054 = vmatprep.mubr.bf16.mxu0 0
        %1055 = vmatmul.mubr.bf16.gmra.mrb[0].mxu0 %v1002
        %v1056 = vpop.f32.mrb[0].mxu0
        %v1057 = vadd.f32 %v984, %v1056
        %v1058 = vpop.f32.mrb[0].mxu0
        %v1059 = vpop.f32.mrb[0].mxu0
        %v1060 = vadd.f32 %v984, %v1059
        %v1061 = vpop.f32.mrb[0].mxu0
        %1062 = vmatprep.mubr.bf16.mxu0 0
        %1063 = vmatmul.mubr.bf16.gmra.mrb[0].mxu0 %v1004
        %v1064 = vpop.f32.mrb[0].mxu0
        %v1065 = vadd.f32 %v984, %v1064
        %v1066 = vpop.f32.mrb[0].mxu0
        %v1067 = vpop.f32.mrb[0].mxu0
        %v1068 = vadd.f32 %v984, %v1067
        %v1069 = vpop.f32.mrb[0].mxu0
        %1070 = vmatprep.mubr.bf16.mxu0 0
        %1071 = vmatmul.mubr.bf16.gmra.mrb[0].mxu0 %v1006
        %v1072 = vpop.f32.mrb[0].mxu0
        %v1073 = vadd.f32 %v984, %v1072
        %v1074 = vpop.f32.mrb[0].mxu0
        %v1075 = vpop.f32.mrb[0].mxu0
        %v1076 = vadd.f32 %v984, %v1075
        %v1077 = vpop.f32.mrb[0].mxu0
        %1078 = vmatprep.mubr.bf16.mxu0 0
        %1079 = vmatmul.mubr.bf16.gmra.mrb[0].mxu0 %v1008
        %v1080 = vpop.f32.mrb[0].mxu0
        %v1081 = vadd.f32 %v984, %v1080
        %v1082 = vpop.f32.mrb[0].mxu0
        %v1083 = vpop.f32.mrb[0].mxu0
        %v1084 = vadd.f32 %v984, %v1083
        %v1085 = vpop.f32.mrb[0].mxu0
        %1086 = vmatprep.mubr.bf16.mxu0 0
        %1087 = vmatmul.mubr.bf16.gmra.mrb[0].mxu0 %v1010
        %v1088 = vpop.f32.mrb[0].mxu0
        %v1089 = vadd.f32 %v984, %v1088
        %v1090 = vpop.f32.mrb[0].mxu0
        %v1091 = vpop.f32.mrb[0].mxu0
        %v1092 = vadd.f32 %v984, %v1091
        %v1093 = vpop.f32.mrb[0].mxu0
        %1094 = vmatprep.mubr.bf16.mxu0 0
        %1095 = vmatmul.mubr.bf16.gmra.mrb[0].mxu0 %v1012
        %v1096 = vpop.f32.mrb[0].mxu0
        %v1097 = vadd.f32 %v984, %v1096
        %v1098 = vpop.f32.mrb[0].mxu0
        %v1099 = vpop.f32.mrb[0].mxu0
        %v1100 = vadd.f32 %v984, %v1099
        %v1101 = vpop.f32.mrb[0].mxu0
        %1102 = vmatprep.mubr.bf16.mxu0 0
        %1103 = vmatmul.mubr.bf16.gmra.mrb[0].mxu0 %v1014
        %v1104 = vpop.f32.mrb[0].mxu0
        %v1105 = vadd.f32 %v984, %v1104
        %v1106 = vpop.f32.mrb[0].mxu0
        %v1107 = vpop.f32.mrb[0].mxu0
        %v1108 = vadd.f32 %v984, %v1107
        %v1109 = vpop.f32.mrb[0].mxu0
        %1110 = vmatprep.mubr.bf16.mxu0 0
        %1111 = vmatmul.mubr.bf16.gmra.mrb[0].mxu0 %v1016
        %v1112 = vpop.f32.mrb[0].mxu0
        %v1113 = vadd.f32 %v984, %v1112
        %v1114 = vpop.f32.mrb[0].mxu0
        %v1115 = vpop.f32.mrb[0].mxu0
        %v1116 = vadd.f32 %v984, %v1115
        %v1117 = vpop.f32.mrb[0].mxu0
        %1118 = vdwg.mxu0
        %v1119 = vmax.f32 %v1057, 0.0
        %v1120 = vmax.f32 %v1060, 0.0
        %v1121 = vmax.f32 %v1065, 0.0
        %v1122 = vmax.f32 %v1068, 0.0
        %v1123 = vmax.f32 %v1073, 0.0
        %v1124 = vmax.f32 %v1076, 0.0
        %v1125 = vmax.f32 %v1081, 0.0
        %v1126 = vmax.f32 %v1084, 0.0
        %v1127 = vmax.f32 %v1089, 0.0
        %v1128 = vmax.f32 %v1092, 0.0
        %v1129 = vmax.f32 %v1097, 0.0
        %v1130 = vmax.f32 %v1100, 0.0
        %v1131 = vmax.f32 %v1105, 0.0
        %v1132 = vmax.f32 %v1108, 0.0
        %v1133 = vmax.f32 %v1113, 0.0
        %v1134 = vmax.f32 %v1116, 0.0
        %1135 = vst [vmem:[%s229] sm:$0xff] %v1119
        %1136 = vst [vmem:[%s229 + $0x8] sm:$0xff] %v1120
        %1137 = vst [vmem:[%s229 + $0x10] sm:$0xff] %v1121
        %1138 = vst [vmem:[%s229 + $0x18] sm:$0xff] %v1122
        %1139 = vst [vmem:[%s229 + $0x20] sm:$0xff] %v1123
        %1140 = vst [vmem:[%s229 + $0x28] sm:$0xff] %v1124
        %1141 = vst [vmem:[%s229 + $0x30] sm:$0xff] %v1125
        %1142 = vst [vmem:[%s229 + $0x38] sm:$0xff] %v1126
        %1143 = vst [vmem:[%s229 + $0x40] sm:$0xff] %v1127
        %1144 = vst [vmem:[%s229 + $0x48] sm:$0xff] %v1128
        %1145 = vst [vmem:[%s229 + $0x50] sm:$0xff] %v1129
        %1146 = vst [vmem:[%s229 + $0x58] sm:$0xff] %v1130
        %1147 = vst [vmem:[%s229 + $0x60] sm:$0xff] %v1131
        %1148 = vst [vmem:[%s229 + $0x68] sm:$0xff] %v1132
        %1149 = vst [vmem:[%s229 + $0x70] sm:$0xff] %v1133
        %1150 = vst [vmem:[%s229 + $0x78] sm:$0xff] %v1134
        %s1151 = sand.u32 %s111, 1
        %s1152 = scalar_lea.sflag [#allocation4], %s1151
        %s1153 = sand.u32 %s111, 1
        %s1154 = smul.addr %s1153, 128
        %s1155 = scalar_lea.vmem [#allocation8], %s1154
        // Predicated region
        $region45: #{tpu_custom_call.1} parent=31 // pred_check
          %p1156 = pneg %p121
        $region46: #{tpu_custom_call.1} parent=31 // pred_check_branch
          %1158 = sbr.rel (%p1156) target = $region48
        $region47: #{tpu_custom_call.1} parent=31 // pred_region
          %s1159 = smul.u32 16, %s26
          %s1161 = ssub.s32 2048, 2048
          %1162 = vsyncadd %s1152, %s1161
          %s1163 = smul.addr %s25, 32
          %s1164 = sadd.s32 %s1159, %s1163
          %s1165 = smul.addr %s1164, 128
          %s1166 = scalar_lea.hbm %s3, %s1165
          %s1167 = sshll.u32 %s1155, 4
          %s1168 = int_to_ptr.vmem [resolvable:$true] %s1167
          %1173 = dma.vmem_to_hbm [thread:$0]  %s1168, 2048, %s1166, %s1152, 128, 128, 8
        $region48: #{tpu_custom_call.1} parent=31 // pred_fallthru
          _
      $region32: #{tpu_custom_call.1} parent=5 // pred_fallthru
        _
      %p1174 = scmp.le.s32.totalorder 2, %s16
      // Predicated region
      $region49: #{tpu_custom_call.1} parent=5 // pred_check
        %p1175 = pneg %p1174
      $region50: #{tpu_custom_call.1} parent=5 // pred_check_branch
        %1177 = sbr.rel (%p1175) target = $region52
      $region51: #{tpu_custom_call.1} parent=5 // pred_region
        %s1178 = ssub.s32 %s16, 2
        // Predicated region
        $region53: #{tpu_custom_call.1} parent=51 // pred_check
          %p1179 = pneg %p127
        $region54: #{tpu_custom_call.1} parent=51 // pred_check_branch
          %1181 = sbr.rel (%p1179) target = $region56
        $region55: #{tpu_custom_call.1} parent=51 // pred_region
          %s1182 = sand.u32 %s112, 1
          %s1183 = scalar_lea.sflag [#allocation4], %s1182
          %s1184 = sand.u32 %s112, 1
          %s1185 = smul.addr %s1184, 128
          %s1186 = scalar_lea.vmem [#allocation8], %s1185
          %1187 = dma.done %s1183, 2048
        $region56: #{tpu_custom_call.1} parent=51 // pred_fallthru
          _
      $region52: #{tpu_custom_call.1} parent=5 // pred_fallthru
        _
    $region6: #{tpu_custom_call.1} parent=1 // loop_footer
      %s20 = sadd.s32 1, %s16
    $region7: #{tpu_custom_call.1} parent=1 // loop_footer_branch
      %15 = sbr.rel target = $region3
    $region8: #{tpu_custom_call.1} parent=1 // loop_exit
      _
    %1188 = vsyncpa [#allocation3], 1
    %s1189 = scalar_lea.sflag [#allocation3], 1
    %1190 = vsyncpa %s1189, 1
    %1191 = vsyncpa [#allocation6], 1
    %1192 = vsyncpa [#allocation4], 1
    %s1193 = scalar_lea.sflag [#allocation4], 1
    %1194 = vsyncpa %s1193, 1

</llo_original>
